<compile_context>
chip_gen: v7x
topology: tpu7x:2x2x1
jax: 0.10.0
libtpu: 0.0.40
codegen_flags: <defaults>
</compile_context>

<pallas_src>
import functools

import numpy as np

import jax
import jax.numpy as jnp
from jax.experimental import pallas as pl
from jax.experimental.pallas import tpu as pltpu

DIM = 5
NUM_LAYERS = 50
PAD = 128   # lane width
ROWS = 8    # sublane width


def make_kernel(h):
    """Kernel over (Lf, 8, 128) packed homogeneous weight tiles; h = dim + 1."""
    assert 1 <= h <= 7, "roll-tree extraction lanes assume dim + 1 <= 7"
    lane_a = 7            # covers live lanes [0..7] if roll matches jnp.roll
    lane_b = PAD - (ROWS - h)   # covers live lanes (wrapping) under the other convention

    def mlp_stack_kernel(x_ref, w_ref, o_ref):
        acc = x_ref[...]                       # (8, 1) homogeneous activation, sublane layout
        num_fused = w_ref.shape[0]
        for m in range(num_fused):
            prod = acc * w_ref[m]              # VPU elementwise; acc broadcasts to (8, 128)
            if m % 2 == 0:
                # in on sublanes / out on lanes: cheap 8-wide sublane reduce.
                acc = jnp.sum(prod, axis=0, keepdims=True)        # (1, 128) lane layout
            else:
                # out on sublanes / in on lanes: live lanes are < h <= 7, so a 3-step
                # rotate tree replaces the full 128-lane reduce.  Padding lanes of the
                # weight tile are zero, so the window sums below are exact.
                t = prod
                t = t + pltpu.roll(t, shift=1, axis=1)
                t = t + pltpu.roll(t, shift=2, axis=1)
                t = t + pltpu.roll(t, shift=4, axis=1)
                # Direction-agnostic extraction: exactly one of lane_a / lane_b holds
                # the sum of all live lanes; the other holds only zero padding.
                acc = t[:, lane_a:lane_a + 1] + t[:, lane_b:lane_b + 1]   # (8, 1)
        o_ref[...] = jnp.broadcast_to(acc, o_ref.shape)

    return mlp_stack_kernel


def pack_params(weights, biases, *, dim):
    """One-time host-side repack: homogeneous lift + pair fusion + (Lf,8,128) tiles.

    Even fused layers store F^T (in-features on sublanes, out on lanes); odd fused
    layers store F (out-features on sublanes, in on lanes).  Done at parameter-setup
    time, NOT in the per-call hot path.
    """
    L = int(weights.shape[0])
    h = dim + 1
    assert h <= ROWS

    W = np.asarray(weights, dtype=np.float64)
    B = np.asarray(biases, dtype=np.float64)

    A = np.zeros((L, h, h), dtype=np.float64)
    A[:, :dim, :dim] = W
    A[:, :dim, dim] = B
    A[:, dim, dim] = 1.0          # constant-1 self-propagates through every layer

    fused = []
    l = 0
    while l < L:
        if l + 1 < L:
            fused.append(A[l + 1] @ A[l])   # pair fusion: exact affine composition
            l += 2
        else:
            fused.append(A[l])
            l += 1
    F = np.stack(fused, axis=0)             # (Lf, h, h); bottom row stays [0..0, 1]
    Lf = F.shape[0]

    w_pack = np.zeros((Lf, ROWS, PAD), dtype=np.float32)
    for m in range(Lf):
        core = F[m].T if m % 2 == 0 else F[m]
        w_pack[m, :h, :h] = core.astype(np.float32)
    return jnp.asarray(w_pack)


@functools.partial(jax.jit, static_argnames=("dim",))
def mlp_stack(x, w_pack, *, dim=DIM):
    """x: (dim,), w_pack: (Lf, 8, 128) packed homogeneous weights -> (dim,)."""
    num_fused = w_pack.shape[0]
    h = dim + 1

    # Homogeneous input column in sublane layout: x at sublanes 0..dim-1, 1 at `dim`.
    x_col = (jnp.zeros((ROWS, 1), jnp.float32)
             .at[:dim, 0].set(x.astype(jnp.float32))
             .at[dim, 0].set(1.0))

    out_pad = pl.pallas_call(
        make_kernel(h),
        out_shape=jax.ShapeDtypeStruct((ROWS, PAD), jnp.float32),
        in_specs=[
            pl.BlockSpec(memory_space=pltpu.MemorySpace.VMEM),  # x column
            pl.BlockSpec(memory_space=pltpu.MemorySpace.VMEM),  # packed weights (~100 KB)
        ],
        out_specs=pl.BlockSpec(memory_space=pltpu.MemorySpace.VMEM),
    )(x_col, w_pack)

    if num_fused % 2 == 1:
        # Last fused layer had even index -> lane-layout output.
        return out_pad[0, :dim]
    # Last fused layer had odd index -> sublane-layout output.
    return out_pad[:dim, 0]


def reference(x, weights, biases):
    y = x.astype(jnp.float32)
    for l in range(weights.shape[0]):
        y = jnp.dot(weights[l], y, precision=jax.lax.Precision.HIGHEST) + biases[l]
    return y


if __name__ == "__main__":
    key = jax.random.PRNGKey(0)
    kx, kw, kb = jax.random.split(key, 3)

    # Deterministic parameter init (PyTorch-like uniform(-1/sqrt(dim), 1/sqrt(dim))).
    bound = 1.0 / (DIM ** 0.5)
    x = jax.random.normal(kx, (DIM,), dtype=jnp.float32)
    weights = jax.random.uniform(
        kw, (NUM_LAYERS, DIM, DIM), minval=-bound, maxval=bound, dtype=jnp.float32
    )
    biases = jax.random.uniform(
        kb, (NUM_LAYERS, DIM), minval=-bound, maxval=bound, dtype=jnp.float32
    )

    # One-time repack at parameter-setup time (hoisted out of the hot path).
    w_pack = pack_params(weights, biases, dim=DIM)
    w_pack = jax.block_until_ready(w_pack)

    out = mlp_stack(x, w_pack, dim=DIM)
    out = jax.block_until_ready(out)

    ref = reference(x, weights, biases)
    assert out.shape == (DIM,)
    assert jnp.allclose(out, ref, atol=1e-4, rtol=1e-4), (out, ref)

    print("KERNEL_OK")
</pallas_src>

<mosaic_0001>
module attributes {stable_mosaic.version = 11 : i64} {
  func.func @mlp_stack_kernel(%arg0: memref<8x1xf32, #tpu.memory_space<vmem>>, %arg1: memref<25x8x128xf32, #tpu.memory_space<vmem>>, %arg2: memref<8x128xf32, #tpu.memory_space<vmem>>) attributes {dimension_semantics = [], scalar_prefetch = 0 : i64, scratch_operands = 0 : i64, tpu.core_type = #tpu.core_type<tc>} {
    %c0 = arith.constant 0 : index
    %c0_0 = arith.constant 0 : index
    %0 = vector.load %arg0[%c0, %c0_0] : memref<8x1xf32, #tpu.memory_space<vmem>>, vector<8x1xf32>
    %c0_1 = arith.constant 0 : index
    %c0_2 = arith.constant 0 : index
    %c0_3 = arith.constant 0 : index
    %1 = vector.load %arg1[%c0_1, %c0_2, %c0_3] : memref<25x8x128xf32, #tpu.memory_space<vmem>>, vector<1x8x128xf32>
    %2 = vector.shape_cast %1 : vector<1x8x128xf32> to vector<8x128xf32>
    %3 = vector.broadcast %0 : vector<8x1xf32> to vector<8x128xf32>
    %4 = arith.mulf %3, %2 : vector<8x128xf32>
    %cst = arith.constant dense<0.000000e+00> : vector<128xf32>
    %5 = vector.multi_reduction <add>, %4, %cst [0] : vector<8x128xf32> to vector<128xf32>
    %6 = vector.shape_cast %5 : vector<128xf32> to vector<1x128xf32>
    %c1 = arith.constant 1 : index
    %c0_4 = arith.constant 0 : index
    %c0_5 = arith.constant 0 : index
    %7 = vector.load %arg1[%c1, %c0_4, %c0_5] : memref<25x8x128xf32, #tpu.memory_space<vmem>>, vector<1x8x128xf32>
    %8 = vector.shape_cast %7 : vector<1x8x128xf32> to vector<8x128xf32>
    %9 = vector.broadcast %6 : vector<1x128xf32> to vector<8x128xf32>
    %10 = arith.mulf %9, %8 : vector<8x128xf32>
    %c1_i32 = arith.constant 1 : i32
    %11 = tpu.dynamic_rotate %10 by %c1_i32 dim 1 : vector<8x128xf32>, i32 -> vector<8x128xf32>
    %12 = arith.addf %10, %11 : vector<8x128xf32>
    %c2_i32 = arith.constant 2 : i32
    %13 = tpu.dynamic_rotate %12 by %c2_i32 dim 1 : vector<8x128xf32>, i32 -> vector<8x128xf32>
    %14 = arith.addf %12, %13 : vector<8x128xf32>
    %c4_i32 = arith.constant 4 : i32
    %15 = tpu.dynamic_rotate %14 by %c4_i32 dim 1 : vector<8x128xf32>, i32 -> vector<8x128xf32>
    %16 = arith.addf %14, %15 : vector<8x128xf32>
    %17 = vector.extract_strided_slice %16 {offsets = [0, 7], sizes = [8, 1], strides = [1, 1]} : vector<8x128xf32> to vector<8x1xf32>
    %18 = vector.extract_strided_slice %16 {offsets = [0, 126], sizes = [8, 1], strides = [1, 1]} : vector<8x128xf32> to vector<8x1xf32>
    %19 = arith.addf %17, %18 : vector<8x1xf32>
    %c2 = arith.constant 2 : index
    %c0_6 = arith.constant 0 : index
    %c0_7 = arith.constant 0 : index
    %20 = vector.load %arg1[%c2, %c0_6, %c0_7] : memref<25x8x128xf32, #tpu.memory_space<vmem>>, vector<1x8x128xf32>
    %21 = vector.shape_cast %20 : vector<1x8x128xf32> to vector<8x128xf32>
    %22 = vector.broadcast %19 : vector<8x1xf32> to vector<8x128xf32>
    %23 = arith.mulf %22, %21 : vector<8x128xf32>
    %cst_8 = arith.constant dense<0.000000e+00> : vector<128xf32>
    %24 = vector.multi_reduction <add>, %23, %cst_8 [0] : vector<8x128xf32> to vector<128xf32>
    %25 = vector.shape_cast %24 : vector<128xf32> to vector<1x128xf32>
    %c3 = arith.constant 3 : index
    %c0_9 = arith.constant 0 : index
    %c0_10 = arith.constant 0 : index
    %26 = vector.load %arg1[%c3, %c0_9, %c0_10] : memref<25x8x128xf32, #tpu.memory_space<vmem>>, vector<1x8x128xf32>
    %27 = vector.shape_cast %26 : vector<1x8x128xf32> to vector<8x128xf32>
    %28 = vector.broadcast %25 : vector<1x128xf32> to vector<8x128xf32>
    %29 = arith.mulf %28, %27 : vector<8x128xf32>
    %c1_i32_11 = arith.constant 1 : i32
    %30 = tpu.dynamic_rotate %29 by %c1_i32_11 dim 1 : vector<8x128xf32>, i32 -> vector<8x128xf32>
    %31 = arith.addf %29, %30 : vector<8x128xf32>
    %c2_i32_12 = arith.constant 2 : i32
    %32 = tpu.dynamic_rotate %31 by %c2_i32_12 dim 1 : vector<8x128xf32>, i32 -> vector<8x128xf32>
    %33 = arith.addf %31, %32 : vector<8x128xf32>
    %c4_i32_13 = arith.constant 4 : i32
    %34 = tpu.dynamic_rotate %33 by %c4_i32_13 dim 1 : vector<8x128xf32>, i32 -> vector<8x128xf32>
    %35 = arith.addf %33, %34 : vector<8x128xf32>
    %36 = vector.extract_strided_slice %35 {offsets = [0, 7], sizes = [8, 1], strides = [1, 1]} : vector<8x128xf32> to vector<8x1xf32>
    %37 = vector.extract_strided_slice %35 {offsets = [0, 126], sizes = [8, 1], strides = [1, 1]} : vector<8x128xf32> to vector<8x1xf32>
    %38 = arith.addf %36, %37 : vector<8x1xf32>
    %c4 = arith.constant 4 : index
    %c0_14 = arith.constant 0 : index
    %c0_15 = arith.constant 0 : index
    %39 = vector.load %arg1[%c4, %c0_14, %c0_15] : memref<25x8x128xf32, #tpu.memory_space<vmem>>, vector<1x8x128xf32>
    %40 = vector.shape_cast %39 : vector<1x8x128xf32> to vector<8x128xf32>
    %41 = vector.broadcast %38 : vector<8x1xf32> to vector<8x128xf32>
    %42 = arith.mulf %41, %40 : vector<8x128xf32>
    %cst_16 = arith.constant dense<0.000000e+00> : vector<128xf32>
    %43 = vector.multi_reduction <add>, %42, %cst_16 [0] : vector<8x128xf32> to vector<128xf32>
    %44 = vector.shape_cast %43 : vector<128xf32> to vector<1x128xf32>
    %c5 = arith.constant 5 : index
    %c0_17 = arith.constant 0 : index
    %c0_18 = arith.constant 0 : index
    %45 = vector.load %arg1[%c5, %c0_17, %c0_18] : memref<25x8x128xf32, #tpu.memory_space<vmem>>, vector<1x8x128xf32>
    %46 = vector.shape_cast %45 : vector<1x8x128xf32> to vector<8x128xf32>
    %47 = vector.broadcast %44 : vector<1x128xf32> to vector<8x128xf32>
    %48 = arith.mulf %47, %46 : vector<8x128xf32>
    %c1_i32_19 = arith.constant 1 : i32
    %49 = tpu.dynamic_rotate %48 by %c1_i32_19 dim 1 : vector<8x128xf32>, i32 -> vector<8x128xf32>
    %50 = arith.addf %48, %49 : vector<8x128xf32>
    %c2_i32_20 = arith.constant 2 : i32
    %51 = tpu.dynamic_rotate %50 by %c2_i32_20 dim 1 : vector<8x128xf32>, i32 -> vector<8x128xf32>
    %52 = arith.addf %50, %51 : vector<8x128xf32>
    %c4_i32_21 = arith.constant 4 : i32
    %53 = tpu.dynamic_rotate %52 by %c4_i32_21 dim 1 : vector<8x128xf32>, i32 -> vector<8x128xf32>
    %54 = arith.addf %52, %53 : vector<8x128xf32>
    %55 = vector.extract_strided_slice %54 {offsets = [0, 7], sizes = [8, 1], strides = [1, 1]} : vector<8x128xf32> to vector<8x1xf32>
    %56 = vector.extract_strided_slice %54 {offsets = [0, 126], sizes = [8, 1], strides = [1, 1]} : vector<8x128xf32> to vector<8x1xf32>
    %57 = arith.addf %55, %56 : vector<8x1xf32>
    %c6 = arith.constant 6 : index
    %c0_22 = arith.constant 0 : index
    %c0_23 = arith.constant 0 : index
    %58 = vector.load %arg1[%c6, %c0_22, %c0_23] : memref<25x8x128xf32, #tpu.memory_space<vmem>>, vector<1x8x128xf32>
    %59 = vector.shape_cast %58 : vector<1x8x128xf32> to vector<8x128xf32>
    %60 = vector.broadcast %57 : vector<8x1xf32> to vector<8x128xf32>
    %61 = arith.mulf %60, %59 : vector<8x128xf32>
    %cst_24 = arith.constant dense<0.000000e+00> : vector<128xf32>
    %62 = vector.multi_reduction <add>, %61, %cst_24 [0] : vector<8x128xf32> to vector<128xf32>
    %63 = vector.shape_cast %62 : vector<128xf32> to vector<1x128xf32>
    %c7 = arith.constant 7 : index
    %c0_25 = arith.constant 0 : index
    %c0_26 = arith.constant 0 : index
    %64 = vector.load %arg1[%c7, %c0_25, %c0_26] : memref<25x8x128xf32, #tpu.memory_space<vmem>>, vector<1x8x128xf32>
    %65 = vector.shape_cast %64 : vector<1x8x128xf32> to vector<8x128xf32>
    %66 = vector.broadcast %63 : vector<1x128xf32> to vector<8x128xf32>
    %67 = arith.mulf %66, %65 : vector<8x128xf32>
    %c1_i32_27 = arith.constant 1 : i32
    %68 = tpu.dynamic_rotate %67 by %c1_i32_27 dim 1 : vector<8x128xf32>, i32 -> vector<8x128xf32>
    %69 = arith.addf %67, %68 : vector<8x128xf32>
    %c2_i32_28 = arith.constant 2 : i32
    %70 = tpu.dynamic_rotate %69 by %c2_i32_28 dim 1 : vector<8x128xf32>, i32 -> vector<8x128xf32>
    %71 = arith.addf %69, %70 : vector<8x128xf32>
    %c4_i32_29 = arith.constant 4 : i32
    %72 = tpu.dynamic_rotate %71 by %c4_i32_29 dim 1 : vector<8x128xf32>, i32 -> vector<8x128xf32>
    %73 = arith.addf %71, %72 : vector<8x128xf32>
    %74 = vector.extract_strided_slice %73 {offsets = [0, 7], sizes = [8, 1], strides = [1, 1]} : vector<8x128xf32> to vector<8x1xf32>
    %75 = vector.extract_strided_slice %73 {offsets = [0, 126], sizes = [8, 1], strides = [1, 1]} : vector<8x128xf32> to vector<8x1xf32>
    %76 = arith.addf %74, %75 : vector<8x1xf32>
    %c8 = arith.constant 8 : index
    %c0_30 = arith.constant 0 : index
    %c0_31 = arith.constant 0 : index
    %77 = vector.load %arg1[%c8, %c0_30, %c0_31] : memref<25x8x128xf32, #tpu.memory_space<vmem>>, vector<1x8x128xf32>
    %78 = vector.shape_cast %77 : vector<1x8x128xf32> to vector<8x128xf32>
    %79 = vector.broadcast %76 : vector<8x1xf32> to vector<8x128xf32>
    %80 = arith.mulf %79, %78 : vector<8x128xf32>
    %cst_32 = arith.constant dense<0.000000e+00> : vector<128xf32>
    %81 = vector.multi_reduction <add>, %80, %cst_32 [0] : vector<8x128xf32> to vector<128xf32>
    %82 = vector.shape_cast %81 : vector<128xf32> to vector<1x128xf32>
    %c9 = arith.constant 9 : index
    %c0_33 = arith.constant 0 : index
    %c0_34 = arith.constant 0 : index
    %83 = vector.load %arg1[%c9, %c0_33, %c0_34] : memref<25x8x128xf32, #tpu.memory_space<vmem>>, vector<1x8x128xf32>
    %84 = vector.shape_cast %83 : vector<1x8x128xf32> to vector<8x128xf32>
    %85 = vector.broadcast %82 : vector<1x128xf32> to vector<8x128xf32>
    %86 = arith.mulf %85, %84 : vector<8x128xf32>
    %c1_i32_35 = arith.constant 1 : i32
    %87 = tpu.dynamic_rotate %86 by %c1_i32_35 dim 1 : vector<8x128xf32>, i32 -> vector<8x128xf32>
    %88 = arith.addf %86, %87 : vector<8x128xf32>
    %c2_i32_36 = arith.constant 2 : i32
    %89 = tpu.dynamic_rotate %88 by %c2_i32_36 dim 1 : vector<8x128xf32>, i32 -> vector<8x128xf32>
    %90 = arith.addf %88, %89 : vector<8x128xf32>
    %c4_i32_37 = arith.constant 4 : i32
    %91 = tpu.dynamic_rotate %90 by %c4_i32_37 dim 1 : vector<8x128xf32>, i32 -> vector<8x128xf32>
    %92 = arith.addf %90, %91 : vector<8x128xf32>
    %93 = vector.extract_strided_slice %92 {offsets = [0, 7], sizes = [8, 1], strides = [1, 1]} : vector<8x128xf32> to vector<8x1xf32>
    %94 = vector.extract_strided_slice %92 {offsets = [0, 126], sizes = [8, 1], strides = [1, 1]} : vector<8x128xf32> to vector<8x1xf32>
    %95 = arith.addf %93, %94 : vector<8x1xf32>
    %c10 = arith.constant 10 : index
    %c0_38 = arith.constant 0 : index
    %c0_39 = arith.constant 0 : index
    %96 = vector.load %arg1[%c10, %c0_38, %c0_39] : memref<25x8x128xf32, #tpu.memory_space<vmem>>, vector<1x8x128xf32>
    %97 = vector.shape_cast %96 : vector<1x8x128xf32> to vector<8x128xf32>
    %98 = vector.broadcast %95 : vector<8x1xf32> to vector<8x128xf32>
    %99 = arith.mulf %98, %97 : vector<8x128xf32>
    %cst_40 = arith.constant dense<0.000000e+00> : vector<128xf32>
    %100 = vector.multi_reduction <add>, %99, %cst_40 [0] : vector<8x128xf32> to vector<128xf32>
    %101 = vector.shape_cast %100 : vector<128xf32> to vector<1x128xf32>
    %c11 = arith.constant 11 : index
    %c0_41 = arith.constant 0 : index
    %c0_42 = arith.constant 0 : index
    %102 = vector.load %arg1[%c11, %c0_41, %c0_42] : memref<25x8x128xf32, #tpu.memory_space<vmem>>, vector<1x8x128xf32>
    %103 = vector.shape_cast %102 : vector<1x8x128xf32> to vector<8x128xf32>
    %104 = vector.broadcast %101 : vector<1x128xf32> to vector<8x128xf32>
    %105 = arith.mulf %104, %103 : vector<8x128xf32>
    %c1_i32_43 = arith.constant 1 : i32
    %106 = tpu.dynamic_rotate %105 by %c1_i32_43 dim 1 : vector<8x128xf32>, i32 -> vector<8x128xf32>
    %107 = arith.addf %105, %106 : vector<8x128xf32>
    %c2_i32_44 = arith.constant 2 : i32
    %108 = tpu.dynamic_rotate %107 by %c2_i32_44 dim 1 : vector<8x128xf32>, i32 -> vector<8x128xf32>
    %109 = arith.addf %107, %108 : vector<8x128xf32>
    %c4_i32_45 = arith.constant 4 : i32
    %110 = tpu.dynamic_rotate %109 by %c4_i32_45 dim 1 : vector<8x128xf32>, i32 -> vector<8x128xf32>
    %111 = arith.addf %109, %110 : vector<8x128xf32>
    %112 = vector.extract_strided_slice %111 {offsets = [0, 7], sizes = [8, 1], strides = [1, 1]} : vector<8x128xf32> to vector<8x1xf32>
    %113 = vector.extract_strided_slice %111 {offsets = [0, 126], sizes = [8, 1], strides = [1, 1]} : vector<8x128xf32> to vector<8x1xf32>
    %114 = arith.addf %112, %113 : vector<8x1xf32>
    %c12 = arith.constant 12 : index
    %c0_46 = arith.constant 0 : index
    %c0_47 = arith.constant 0 : index
    %115 = vector.load %arg1[%c12, %c0_46, %c0_47] : memref<25x8x128xf32, #tpu.memory_space<vmem>>, vector<1x8x128xf32>
    %116 = vector.shape_cast %115 : vector<1x8x128xf32> to vector<8x128xf32>
    %117 = vector.broadcast %114 : vector<8x1xf32> to vector<8x128xf32>
    %118 = arith.mulf %117, %116 : vector<8x128xf32>
    %cst_48 = arith.constant dense<0.000000e+00> : vector<128xf32>
    %119 = vector.multi_reduction <add>, %118, %cst_48 [0] : vector<8x128xf32> to vector<128xf32>
    %120 = vector.shape_cast %119 : vector<128xf32> to vector<1x128xf32>
    %c13 = arith.constant 13 : index
    %c0_49 = arith.constant 0 : index
    %c0_50 = arith.constant 0 : index
    %121 = vector.load %arg1[%c13, %c0_49, %c0_50] : memref<25x8x128xf32, #tpu.memory_space<vmem>>, vector<1x8x128xf32>
    %122 = vector.shape_cast %121 : vector<1x8x128xf32> to vector<8x128xf32>
    %123 = vector.broadcast %120 : vector<1x128xf32> to vector<8x128xf32>
    %124 = arith.mulf %123, %122 : vector<8x128xf32>
    %c1_i32_51 = arith.constant 1 : i32
    %125 = tpu.dynamic_rotate %124 by %c1_i32_51 dim 1 : vector<8x128xf32>, i32 -> vector<8x128xf32>
    %126 = arith.addf %124, %125 : vector<8x128xf32>
    %c2_i32_52 = arith.constant 2 : i32
    %127 = tpu.dynamic_rotate %126 by %c2_i32_52 dim 1 : vector<8x128xf32>, i32 -> vector<8x128xf32>
    %128 = arith.addf %126, %127 : vector<8x128xf32>
    %c4_i32_53 = arith.constant 4 : i32
    %129 = tpu.dynamic_rotate %128 by %c4_i32_53 dim 1 : vector<8x128xf32>, i32 -> vector<8x128xf32>
    %130 = arith.addf %128, %129 : vector<8x128xf32>
    %131 = vector.extract_strided_slice %130 {offsets = [0, 7], sizes = [8, 1], strides = [1, 1]} : vector<8x128xf32> to vector<8x1xf32>
    %132 = vector.extract_strided_slice %130 {offsets = [0, 126], sizes = [8, 1], strides = [1, 1]} : vector<8x128xf32> to vector<8x1xf32>
    %133 = arith.addf %131, %132 : vector<8x1xf32>
    %c14 = arith.constant 14 : index
    %c0_54 = arith.constant 0 : index
    %c0_55 = arith.constant 0 : index
    %134 = vector.load %arg1[%c14, %c0_54, %c0_55] : memref<25x8x128xf32, #tpu.memory_space<vmem>>, vector<1x8x128xf32>
    %135 = vector.shape_cast %134 : vector<1x8x128xf32> to vector<8x128xf32>
    %136 = vector.broadcast %133 : vector<8x1xf32> to vector<8x128xf32>
    %137 = arith.mulf %136, %135 : vector<8x128xf32>
    %cst_56 = arith.constant dense<0.000000e+00> : vector<128xf32>
    %138 = vector.multi_reduction <add>, %137, %cst_56 [0] : vector<8x128xf32> to vector<128xf32>
    %139 = vector.shape_cast %138 : vector<128xf32> to vector<1x128xf32>
    %c15 = arith.constant 15 : index
    %c0_57 = arith.constant 0 : index
    %c0_58 = arith.constant 0 : index
    %140 = vector.load %arg1[%c15, %c0_57, %c0_58] : memref<25x8x128xf32, #tpu.memory_space<vmem>>, vector<1x8x128xf32>
    %141 = vector.shape_cast %140 : vector<1x8x128xf32> to vector<8x128xf32>
    %142 = vector.broadcast %139 : vector<1x128xf32> to vector<8x128xf32>
    %143 = arith.mulf %142, %141 : vector<8x128xf32>
    %c1_i32_59 = arith.constant 1 : i32
    %144 = tpu.dynamic_rotate %143 by %c1_i32_59 dim 1 : vector<8x128xf32>, i32 -> vector<8x128xf32>
    %145 = arith.addf %143, %144 : vector<8x128xf32>
    %c2_i32_60 = arith.constant 2 : i32
    %146 = tpu.dynamic_rotate %145 by %c2_i32_60 dim 1 : vector<8x128xf32>, i32 -> vector<8x128xf32>
    %147 = arith.addf %145, %146 : vector<8x128xf32>
    %c4_i32_61 = arith.constant 4 : i32
    %148 = tpu.dynamic_rotate %147 by %c4_i32_61 dim 1 : vector<8x128xf32>, i32 -> vector<8x128xf32>
    %149 = arith.addf %147, %148 : vector<8x128xf32>
    %150 = vector.extract_strided_slice %149 {offsets = [0, 7], sizes = [8, 1], strides = [1, 1]} : vector<8x128xf32> to vector<8x1xf32>
    %151 = vector.extract_strided_slice %149 {offsets = [0, 126], sizes = [8, 1], strides = [1, 1]} : vector<8x128xf32> to vector<8x1xf32>
    %152 = arith.addf %150, %151 : vector<8x1xf32>
    %c16 = arith.constant 16 : index
    %c0_62 = arith.constant 0 : index
    %c0_63 = arith.constant 0 : index
    %153 = vector.load %arg1[%c16, %c0_62, %c0_63] : memref<25x8x128xf32, #tpu.memory_space<vmem>>, vector<1x8x128xf32>
    %154 = vector.shape_cast %153 : vector<1x8x128xf32> to vector<8x128xf32>
    %155 = vector.broadcast %152 : vector<8x1xf32> to vector<8x128xf32>
    %156 = arith.mulf %155, %154 : vector<8x128xf32>
    %cst_64 = arith.constant dense<0.000000e+00> : vector<128xf32>
    %157 = vector.multi_reduction <add>, %156, %cst_64 [0] : vector<8x128xf32> to vector<128xf32>
    %158 = vector.shape_cast %157 : vector<128xf32> to vector<1x128xf32>
    %c17 = arith.constant 17 : index
    %c0_65 = arith.constant 0 : index
    %c0_66 = arith.constant 0 : index
    %159 = vector.load %arg1[%c17, %c0_65, %c0_66] : memref<25x8x128xf32, #tpu.memory_space<vmem>>, vector<1x8x128xf32>
    %160 = vector.shape_cast %159 : vector<1x8x128xf32> to vector<8x128xf32>
    %161 = vector.broadcast %158 : vector<1x128xf32> to vector<8x128xf32>
    %162 = arith.mulf %161, %160 : vector<8x128xf32>
    %c1_i32_67 = arith.constant 1 : i32
    %163 = tpu.dynamic_rotate %162 by %c1_i32_67 dim 1 : vector<8x128xf32>, i32 -> vector<8x128xf32>
    %164 = arith.addf %162, %163 : vector<8x128xf32>
    %c2_i32_68 = arith.constant 2 : i32
    %165 = tpu.dynamic_rotate %164 by %c2_i32_68 dim 1 : vector<8x128xf32>, i32 -> vector<8x128xf32>
    %166 = arith.addf %164, %165 : vector<8x128xf32>
    %c4_i32_69 = arith.constant 4 : i32
    %167 = tpu.dynamic_rotate %166 by %c4_i32_69 dim 1 : vector<8x128xf32>, i32 -> vector<8x128xf32>
    %168 = arith.addf %166, %167 : vector<8x128xf32>
    %169 = vector.extract_strided_slice %168 {offsets = [0, 7], sizes = [8, 1], strides = [1, 1]} : vector<8x128xf32> to vector<8x1xf32>
    %170 = vector.extract_strided_slice %168 {offsets = [0, 126], sizes = [8, 1], strides = [1, 1]} : vector<8x128xf32> to vector<8x1xf32>
    %171 = arith.addf %169, %170 : vector<8x1xf32>
    %c18 = arith.constant 18 : index
    %c0_70 = arith.constant 0 : index
    %c0_71 = arith.constant 0 : index
    %172 = vector.load %arg1[%c18, %c0_70, %c0_71] : memref<25x8x128xf32, #tpu.memory_space<vmem>>, vector<1x8x128xf32>
    %173 = vector.shape_cast %172 : vector<1x8x128xf32> to vector<8x128xf32>
    %174 = vector.broadcast %171 : vector<8x1xf32> to vector<8x128xf32>
    %175 = arith.mulf %174, %173 : vector<8x128xf32>
    %cst_72 = arith.constant dense<0.000000e+00> : vector<128xf32>
    %176 = vector.multi_reduction <add>, %175, %cst_72 [0] : vector<8x128xf32> to vector<128xf32>
    %177 = vector.shape_cast %176 : vector<128xf32> to vector<1x128xf32>
    %c19 = arith.constant 19 : index
    %c0_73 = arith.constant 0 : index
    %c0_74 = arith.constant 0 : index
    %178 = vector.load %arg1[%c19, %c0_73, %c0_74] : memref<25x8x128xf32, #tpu.memory_space<vmem>>, vector<1x8x128xf32>
    %179 = vector.shape_cast %178 : vector<1x8x128xf32> to vector<8x128xf32>
    %180 = vector.broadcast %177 : vector<1x128xf32> to vector<8x128xf32>
    %181 = arith.mulf %180, %179 : vector<8x128xf32>
    %c1_i32_75 = arith.constant 1 : i32
    %182 = tpu.dynamic_rotate %181 by %c1_i32_75 dim 1 : vector<8x128xf32>, i32 -> vector<8x128xf32>
    %183 = arith.addf %181, %182 : vector<8x128xf32>
    %c2_i32_76 = arith.constant 2 : i32
    %184 = tpu.dynamic_rotate %183 by %c2_i32_76 dim 1 : vector<8x128xf32>, i32 -> vector<8x128xf32>
    %185 = arith.addf %183, %184 : vector<8x128xf32>
    %c4_i32_77 = arith.constant 4 : i32
    %186 = tpu.dynamic_rotate %185 by %c4_i32_77 dim 1 : vector<8x128xf32>, i32 -> vector<8x128xf32>
    %187 = arith.addf %185, %186 : vector<8x128xf32>
    %188 = vector.extract_strided_slice %187 {offsets = [0, 7], sizes = [8, 1], strides = [1, 1]} : vector<8x128xf32> to vector<8x1xf32>
    %189 = vector.extract_strided_slice %187 {offsets = [0, 126], sizes = [8, 1], strides = [1, 1]} : vector<8x128xf32> to vector<8x1xf32>
    %190 = arith.addf %188, %189 : vector<8x1xf32>
    %c20 = arith.constant 20 : index
    %c0_78 = arith.constant 0 : index
    %c0_79 = arith.constant 0 : index
    %191 = vector.load %arg1[%c20, %c0_78, %c0_79] : memref<25x8x128xf32, #tpu.memory_space<vmem>>, vector<1x8x128xf32>
    %192 = vector.shape_cast %191 : vector<1x8x128xf32> to vector<8x128xf32>
    %193 = vector.broadcast %190 : vector<8x1xf32> to vector<8x128xf32>
    %194 = arith.mulf %193, %192 : vector<8x128xf32>
    %cst_80 = arith.constant dense<0.000000e+00> : vector<128xf32>
    %195 = vector.multi_reduction <add>, %194, %cst_80 [0] : vector<8x128xf32> to vector<128xf32>
    %196 = vector.shape_cast %195 : vector<128xf32> to vector<1x128xf32>
    %c21 = arith.constant 21 : index
    %c0_81 = arith.constant 0 : index
    %c0_82 = arith.constant 0 : index
    %197 = vector.load %arg1[%c21, %c0_81, %c0_82] : memref<25x8x128xf32, #tpu.memory_space<vmem>>, vector<1x8x128xf32>
    %198 = vector.shape_cast %197 : vector<1x8x128xf32> to vector<8x128xf32>
    %199 = vector.broadcast %196 : vector<1x128xf32> to vector<8x128xf32>
    %200 = arith.mulf %199, %198 : vector<8x128xf32>
    %c1_i32_83 = arith.constant 1 : i32
    %201 = tpu.dynamic_rotate %200 by %c1_i32_83 dim 1 : vector<8x128xf32>, i32 -> vector<8x128xf32>
    %202 = arith.addf %200, %201 : vector<8x128xf32>
    %c2_i32_84 = arith.constant 2 : i32
    %203 = tpu.dynamic_rotate %202 by %c2_i32_84 dim 1 : vector<8x128xf32>, i32 -> vector<8x128xf32>
    %204 = arith.addf %202, %203 : vector<8x128xf32>
    %c4_i32_85 = arith.constant 4 : i32
    %205 = tpu.dynamic_rotate %204 by %c4_i32_85 dim 1 : vector<8x128xf32>, i32 -> vector<8x128xf32>
    %206 = arith.addf %204, %205 : vector<8x128xf32>
    %207 = vector.extract_strided_slice %206 {offsets = [0, 7], sizes = [8, 1], strides = [1, 1]} : vector<8x128xf32> to vector<8x1xf32>
    %208 = vector.extract_strided_slice %206 {offsets = [0, 126], sizes = [8, 1], strides = [1, 1]} : vector<8x128xf32> to vector<8x1xf32>
    %209 = arith.addf %207, %208 : vector<8x1xf32>
    %c22 = arith.constant 22 : index
    %c0_86 = arith.constant 0 : index
    %c0_87 = arith.constant 0 : index
    %210 = vector.load %arg1[%c22, %c0_86, %c0_87] : memref<25x8x128xf32, #tpu.memory_space<vmem>>, vector<1x8x128xf32>
    %211 = vector.shape_cast %210 : vector<1x8x128xf32> to vector<8x128xf32>
    %212 = vector.broadcast %209 : vector<8x1xf32> to vector<8x128xf32>
    %213 = arith.mulf %212, %211 : vector<8x128xf32>
    %cst_88 = arith.constant dense<0.000000e+00> : vector<128xf32>
    %214 = vector.multi_reduction <add>, %213, %cst_88 [0] : vector<8x128xf32> to vector<128xf32>
    %215 = vector.shape_cast %214 : vector<128xf32> to vector<1x128xf32>
    %c23 = arith.constant 23 : index
    %c0_89 = arith.constant 0 : index
    %c0_90 = arith.constant 0 : index
    %216 = vector.load %arg1[%c23, %c0_89, %c0_90] : memref<25x8x128xf32, #tpu.memory_space<vmem>>, vector<1x8x128xf32>
    %217 = vector.shape_cast %216 : vector<1x8x128xf32> to vector<8x128xf32>
    %218 = vector.broadcast %215 : vector<1x128xf32> to vector<8x128xf32>
    %219 = arith.mulf %218, %217 : vector<8x128xf32>
    %c1_i32_91 = arith.constant 1 : i32
    %220 = tpu.dynamic_rotate %219 by %c1_i32_91 dim 1 : vector<8x128xf32>, i32 -> vector<8x128xf32>
    %221 = arith.addf %219, %220 : vector<8x128xf32>
    %c2_i32_92 = arith.constant 2 : i32
    %222 = tpu.dynamic_rotate %221 by %c2_i32_92 dim 1 : vector<8x128xf32>, i32 -> vector<8x128xf32>
    %223 = arith.addf %221, %222 : vector<8x128xf32>
    %c4_i32_93 = arith.constant 4 : i32
    %224 = tpu.dynamic_rotate %223 by %c4_i32_93 dim 1 : vector<8x128xf32>, i32 -> vector<8x128xf32>
    %225 = arith.addf %223, %224 : vector<8x128xf32>
    %226 = vector.extract_strided_slice %225 {offsets = [0, 7], sizes = [8, 1], strides = [1, 1]} : vector<8x128xf32> to vector<8x1xf32>
    %227 = vector.extract_strided_slice %225 {offsets = [0, 126], sizes = [8, 1], strides = [1, 1]} : vector<8x128xf32> to vector<8x1xf32>
    %228 = arith.addf %226, %227 : vector<8x1xf32>
    %c24 = arith.constant 24 : index
    %c0_94 = arith.constant 0 : index
    %c0_95 = arith.constant 0 : index
    %229 = vector.load %arg1[%c24, %c0_94, %c0_95] : memref<25x8x128xf32, #tpu.memory_space<vmem>>, vector<1x8x128xf32>
    %230 = vector.shape_cast %229 : vector<1x8x128xf32> to vector<8x128xf32>
    %231 = vector.broadcast %228 : vector<8x1xf32> to vector<8x128xf32>
    %232 = arith.mulf %231, %230 : vector<8x128xf32>
    %cst_96 = arith.constant dense<0.000000e+00> : vector<128xf32>
    %233 = vector.multi_reduction <add>, %232, %cst_96 [0] : vector<8x128xf32> to vector<128xf32>
    %234 = vector.shape_cast %233 : vector<128xf32> to vector<1x128xf32>
    %235 = vector.shape_cast %234 : vector<1x128xf32> to vector<1x128xf32>
    %236 = vector.broadcast %235 : vector<1x128xf32> to vector<8x128xf32>
    %c0_97 = arith.constant 0 : index
    %c0_98 = arith.constant 0 : index
    %237 = vector.load %arg2[%c0_97, %c0_98] : memref<8x128xf32, #tpu.memory_space<vmem>>, vector<8x128xf32>
    tpu.vector_store %arg2[%c0_97, %c0_98], %236 {strides = array<i32>} : memref<8x128xf32, #tpu.memory_space<vmem>>, vector<8x128xf32>,
    return
  }
}

</mosaic_0001>

<llo_original>
// kernel: mlp_stack.1
$region0: #{mlp_stack.1}
  #allocation0 [shape = 'u32[]', space=smem, size = 0x4, offset = 0x4, fixed_abs, tag = 'smem constant byte address 0x4 - core index']
  #allocation1 [shape = 'u32[144,128]{1,0:T(1,128)}', space=vmem, size = 0x12000, scoped, tag = 'internal scratch']
  %s0 = inlined_call_operand.vmem [shape: f32[8,1], index: 0, kind: input, shape index: {}]
  %s1 = inlined_call_operand.hbm [shape: f32[25,8,128], index: 1, kind: input, shape index: {}]
  %s2 = inlined_call_operand.vmem [shape: f32[8,128], index: 2, kind: output, shape index: {}]
  %s3 = sld [smem:[#allocation0]]
  $region22: #{mlp_stack.1} parent=0
    _
  %s5 = ssub.s32 1, %s3
  %s6 = scalar_select 0, %s5, %s3
  $region1: #{mlp_stack.1} parent=0
    #allocation2 [shape = 'u8[102400]{0}', space=vmem, size = 0x19000, scoped, tag = 'input window, operand 1, single buffered']
    #allocation3 [shape = 's32[1]{0}', space=sflag, size = 0x4, scoped, tag = 'scoped memory for mlp_stack.1']
    %7 = vsyncpa [#allocation3], 0
    // Predicated region
    $region2: #{mlp_stack.1} parent=1 // pred_check
      _
    $region3: #{mlp_stack.1} parent=1 // pred_check_branch
      %9 = sbr.rel (0) target = $region5
    $region4: #{mlp_stack.1} parent=1 // pred_region
      _
    $region5: #{mlp_stack.1} parent=1 // pred_fallthru
      _
    // Predicated region
    $region6: #{mlp_stack.1} parent=1 // pred_check
      _
    $region7: #{mlp_stack.1} parent=1 // pred_check_branch
      %11 = sbr.rel (0) target = $region9
    $region8: #{mlp_stack.1} parent=1 // pred_region
      %s13 = ssub.s32 3200, 3200
      %14 = vsyncadd [#allocation3], %s13
      %s15 = sshll.u32 [#allocation2], 4
      %s16 = int_to_ptr.vmem [resolvable:$true] %s15
      %21 = dma.hbm_to_vmem [thread:$0]  %s1, 3200, %s16, [#allocation3], 128, 128, 8
    $region9: #{mlp_stack.1} parent=1 // pred_fallthru
      _
    // Predicated region
    $region10: #{mlp_stack.1} parent=1 // pred_check
      _
    $region11: #{mlp_stack.1} parent=1 // pred_check_branch
      %23 = sbr.rel (0) target = $region13
    $region12: #{mlp_stack.1} parent=1 // pred_region
      %24 = dma.done [#allocation3], 3200
    $region13: #{mlp_stack.1} parent=1 // pred_fallthru
      _
    %v25 = vld [vmem:[%s0] sm:$0xff]
    %v26 = vld [vmem:[#allocation2] sm:$0xff]
    %28 = vset.pattern.permute.xlu0 0
    %29 = vperm.xlu0 %28, %v25
    %v30 = vpop.permute.xlu0 %29
    %v32 = vmul.f32 %v30, %v26
    %v33 = vrot.slane %v32, 4
    %v34 = vadd.f32 %v32, %v33
    %v35 = vrot.slane %v34, 2
    %v36 = vadd.f32 %v34, %v35
    %v37 = vrot.slane %v36, 1
    %v38 = vadd.f32 %v36, %v37
    %s39 = scalar_lea.vmem [#allocation2], 8
    %v40 = vld [vmem:[%s39] sm:$0xff]
    %v41 = vmul.f32 %v38, %v40
    %42 = vrot.lane.b32.xlu0 %v41, 1
    %v43 = vpop.permute.xlu0 %42
    %v44 = vadd.f32 %v41, %v43
    %45 = vrot.lane.b32.xlu0 %v44, 2
    %v46 = vpop.permute.xlu0 %45
    %v47 = vadd.f32 %v44, %v46
    %48 = vrot.lane.b32.xlu0 %v47, 4
    %v49 = vpop.permute.xlu0 %48
    %v50 = vadd.f32 %v47, %v49
    %52 = vrot.lane.b32.xlu0 %v50, 9
    %v53 = vpop.permute.xlu0 %52
    %v55 = vadd.f32 %v50, %v53
    %s56 = scalar_lea.vmem [#allocation2], 16
    %v57 = vld [vmem:[%s56] sm:$0xff]
    %59 = vset.pattern.permute.xlu0 7
    %60 = vperm.xlu0 %59, %v55
    %v61 = vpop.permute.xlu0 %60
    %v63 = vmul.f32 %v61, %v57
    %v64 = vrot.slane %v63, 4
    %v65 = vadd.f32 %v63, %v64
    %v66 = vrot.slane %v65, 2
    %v67 = vadd.f32 %v65, %v66
    %v68 = vrot.slane %v67, 1
    %v69 = vadd.f32 %v67, %v68
    %s70 = scalar_lea.vmem [#allocation2], 24
    %v71 = vld [vmem:[%s70] sm:$0xff]
    %v72 = vmul.f32 %v69, %v71
    %73 = vrot.lane.b32.xlu0 %v72, 1
    %v74 = vpop.permute.xlu0 %73
    %v75 = vadd.f32 %v72, %v74
    %76 = vrot.lane.b32.xlu0 %v75, 2
    %v77 = vpop.permute.xlu0 %76
    %v78 = vadd.f32 %v75, %v77
    %79 = vrot.lane.b32.xlu0 %v78, 4
    %v80 = vpop.permute.xlu0 %79
    %v81 = vadd.f32 %v78, %v80
    %83 = vrot.lane.b32.xlu0 %v81, 9
    %v84 = vpop.permute.xlu0 %83
    %v86 = vadd.f32 %v81, %v84
    %s87 = scalar_lea.vmem [#allocation2], 32
    %v88 = vld [vmem:[%s87] sm:$0xff]
    %90 = vset.pattern.permute.xlu0 7
    %91 = vperm.xlu0 %90, %v86
    %v92 = vpop.permute.xlu0 %91
    %v94 = vmul.f32 %v92, %v88
    %v95 = vrot.slane %v94, 4
    %v96 = vadd.f32 %v94, %v95
    %v97 = vrot.slane %v96, 2
    %v98 = vadd.f32 %v96, %v97
    %v99 = vrot.slane %v98, 1
    %v100 = vadd.f32 %v98, %v99
    %s101 = scalar_lea.vmem [#allocation2], 40
    %v102 = vld [vmem:[%s101] sm:$0xff]
    %v103 = vmul.f32 %v100, %v102
    %104 = vrot.lane.b32.xlu0 %v103, 1
    %v105 = vpop.permute.xlu0 %104
    %v106 = vadd.f32 %v103, %v105
    %107 = vrot.lane.b32.xlu0 %v106, 2
    %v108 = vpop.permute.xlu0 %107
    %v109 = vadd.f32 %v106, %v108
    %110 = vrot.lane.b32.xlu0 %v109, 4
    %v111 = vpop.permute.xlu0 %110
    %v112 = vadd.f32 %v109, %v111
    %114 = vrot.lane.b32.xlu0 %v112, 9
    %v115 = vpop.permute.xlu0 %114
    %v117 = vadd.f32 %v112, %v115
    %s118 = scalar_lea.vmem [#allocation2], 48
    %v119 = vld [vmem:[%s118] sm:$0xff]
    %121 = vset.pattern.permute.xlu0 7
    %122 = vperm.xlu0 %121, %v117
    %v123 = vpop.permute.xlu0 %122
    %v125 = vmul.f32 %v123, %v119
    %v126 = vrot.slane %v125, 4
    %v127 = vadd.f32 %v125, %v126
    %v128 = vrot.slane %v127, 2
    %v129 = vadd.f32 %v127, %v128
    %v130 = vrot.slane %v129, 1
    %v131 = vadd.f32 %v129, %v130
    %s132 = scalar_lea.vmem [#allocation2], 56
    %v133 = vld [vmem:[%s132] sm:$0xff]
    %v134 = vmul.f32 %v131, %v133
    %135 = vrot.lane.b32.xlu0 %v134, 1
    %v136 = vpop.permute.xlu0 %135
    %v137 = vadd.f32 %v134, %v136
    %138 = vrot.lane.b32.xlu0 %v137, 2
    %v139 = vpop.permute.xlu0 %138
    %v140 = vadd.f32 %v137, %v139
    %141 = vrot.lane.b32.xlu0 %v140, 4
    %v142 = vpop.permute.xlu0 %141
    %v143 = vadd.f32 %v140, %v142
    %145 = vrot.lane.b32.xlu0 %v143, 9
    %v146 = vpop.permute.xlu0 %145
    %v148 = vadd.f32 %v143, %v146
    %s149 = scalar_lea.vmem [#allocation2], 64
    %v150 = vld [vmem:[%s149] sm:$0xff]
    %152 = vset.pattern.permute.xlu0 7
    %153 = vperm.xlu0 %152, %v148
    %v154 = vpop.permute.xlu0 %153
    %v156 = vmul.f32 %v154, %v150
    %v157 = vrot.slane %v156, 4
    %v158 = vadd.f32 %v156, %v157
    %v159 = vrot.slane %v158, 2
    %v160 = vadd.f32 %v158, %v159
    %v161 = vrot.slane %v160, 1
    %v162 = vadd.f32 %v160, %v161
    %s163 = scalar_lea.vmem [#allocation2], 72
    %v164 = vld [vmem:[%s163] sm:$0xff]
    %v165 = vmul.f32 %v162, %v164
    %166 = vrot.lane.b32.xlu0 %v165, 1
    %v167 = vpop.permute.xlu0 %166
    %v168 = vadd.f32 %v165, %v167
    %169 = vrot.lane.b32.xlu0 %v168, 2
    %v170 = vpop.permute.xlu0 %169
    %v171 = vadd.f32 %v168, %v170
    %172 = vrot.lane.b32.xlu0 %v171, 4
    %v173 = vpop.permute.xlu0 %172
    %v174 = vadd.f32 %v171, %v173
    %176 = vrot.lane.b32.xlu0 %v174, 9
    %v177 = vpop.permute.xlu0 %176
    %v179 = vadd.f32 %v174, %v177
    %s180 = scalar_lea.vmem [#allocation2], 80
    %v181 = vld [vmem:[%s180] sm:$0xff]
    %183 = vset.pattern.permute.xlu0 7
    %184 = vperm.xlu0 %183, %v179
    %v185 = vpop.permute.xlu0 %184
    %v187 = vmul.f32 %v185, %v181
    %v188 = vrot.slane %v187, 4
    %v189 = vadd.f32 %v187, %v188
    %v190 = vrot.slane %v189, 2
    %v191 = vadd.f32 %v189, %v190
    %v192 = vrot.slane %v191, 1
    %v193 = vadd.f32 %v191, %v192
    %s194 = scalar_lea.vmem [#allocation2], 88
    %v195 = vld [vmem:[%s194] sm:$0xff]
    %v196 = vmul.f32 %v193, %v195
    %197 = vrot.lane.b32.xlu0 %v196, 1
    %v198 = vpop.permute.xlu0 %197
    %v199 = vadd.f32 %v196, %v198
    %200 = vrot.lane.b32.xlu0 %v199, 2
    %v201 = vpop.permute.xlu0 %200
    %v202 = vadd.f32 %v199, %v201
    %203 = vrot.lane.b32.xlu0 %v202, 4
    %v204 = vpop.permute.xlu0 %203
    %v205 = vadd.f32 %v202, %v204
    %207 = vrot.lane.b32.xlu0 %v205, 9
    %v208 = vpop.permute.xlu0 %207
    %v210 = vadd.f32 %v205, %v208
    %s211 = scalar_lea.vmem [#allocation2], 96
    %v212 = vld [vmem:[%s211] sm:$0xff]
    %214 = vset.pattern.permute.xlu0 7
    %215 = vperm.xlu0 %214, %v210
    %v216 = vpop.permute.xlu0 %215
    %v218 = vmul.f32 %v216, %v212
    %v219 = vrot.slane %v218, 4
    %v220 = vadd.f32 %v218, %v219
    %v221 = vrot.slane %v220, 2
    %v222 = vadd.f32 %v220, %v221
    %v223 = vrot.slane %v222, 1
    %v224 = vadd.f32 %v222, %v223
    %s225 = scalar_lea.vmem [#allocation2], 104
    %v226 = vld [vmem:[%s225] sm:$0xff]
    %v227 = vmul.f32 %v224, %v226
    %228 = vrot.lane.b32.xlu0 %v227, 1
    %v229 = vpop.permute.xlu0 %228
    %v230 = vadd.f32 %v227, %v229
    %231 = vrot.lane.b32.xlu0 %v230, 2
    %v232 = vpop.permute.xlu0 %231
    %v233 = vadd.f32 %v230, %v232
    %234 = vrot.lane.b32.xlu0 %v233, 4
    %v235 = vpop.permute.xlu0 %234
    %v236 = vadd.f32 %v233, %v235
    %238 = vrot.lane.b32.xlu0 %v236, 9
    %v239 = vpop.permute.xlu0 %238
    %v241 = vadd.f32 %v236, %v239
    %s242 = scalar_lea.vmem [#allocation2], 112
    %v243 = vld [vmem:[%s242] sm:$0xff]
    %245 = vset.pattern.permute.xlu0 7
    %246 = vperm.xlu0 %245, %v241
    %v247 = vpop.permute.xlu0 %246
    %v249 = vmul.f32 %v247, %v243
    %v250 = vrot.slane %v249, 4
    %v251 = vadd.f32 %v249, %v250
    %v252 = vrot.slane %v251, 2
    %v253 = vadd.f32 %v251, %v252
    %v254 = vrot.slane %v253, 1
    %v255 = vadd.f32 %v253, %v254
    %s256 = scalar_lea.vmem [#allocation2], 120
    %v257 = vld [vmem:[%s256] sm:$0xff]
    %v258 = vmul.f32 %v255, %v257
    %259 = vrot.lane.b32.xlu0 %v258, 1
    %v260 = vpop.permute.xlu0 %259
    %v261 = vadd.f32 %v258, %v260
    %262 = vrot.lane.b32.xlu0 %v261, 2
    %v263 = vpop.permute.xlu0 %262
    %v264 = vadd.f32 %v261, %v263
    %265 = vrot.lane.b32.xlu0 %v264, 4
    %v266 = vpop.permute.xlu0 %265
    %v267 = vadd.f32 %v264, %v266
    %269 = vrot.lane.b32.xlu0 %v267, 9
    %v270 = vpop.permute.xlu0 %269
    %v272 = vadd.f32 %v267, %v270
    %s273 = scalar_lea.vmem [#allocation2], 128
    %v274 = vld [vmem:[%s273] sm:$0xff]
    %276 = vset.pattern.permute.xlu0 7
    %277 = vperm.xlu0 %276, %v272
    %v278 = vpop.permute.xlu0 %277
    %v280 = vmul.f32 %v278, %v274
    %v281 = vrot.slane %v280, 4
    %v282 = vadd.f32 %v280, %v281
    %v283 = vrot.slane %v282, 2
    %v284 = vadd.f32 %v282, %v283
    %v285 = vrot.slane %v284, 1
    %v286 = vadd.f32 %v284, %v285
    %s287 = scalar_lea.vmem [#allocation2], 136
    %v288 = vld [vmem:[%s287] sm:$0xff]
    %v289 = vmul.f32 %v286, %v288
    %290 = vrot.lane.b32.xlu0 %v289, 1
    %v291 = vpop.permute.xlu0 %290
    %v292 = vadd.f32 %v289, %v291
    %293 = vrot.lane.b32.xlu0 %v292, 2
    %v294 = vpop.permute.xlu0 %293
    %v295 = vadd.f32 %v292, %v294
    %296 = vrot.lane.b32.xlu0 %v295, 4
    %v297 = vpop.permute.xlu0 %296
    %v298 = vadd.f32 %v295, %v297
    %300 = vrot.lane.b32.xlu0 %v298, 9
    %v301 = vpop.permute.xlu0 %300
    %v303 = vadd.f32 %v298, %v301
    %s304 = scalar_lea.vmem [#allocation2], 144
    %v305 = vld [vmem:[%s304] sm:$0xff]
    %307 = vset.pattern.permute.xlu0 7
    %308 = vperm.xlu0 %307, %v303
    %v309 = vpop.permute.xlu0 %308
    %v311 = vmul.f32 %v309, %v305
    %v312 = vrot.slane %v311, 4
    %v313 = vadd.f32 %v311, %v312
    %v314 = vrot.slane %v313, 2
    %v315 = vadd.f32 %v313, %v314
    %v316 = vrot.slane %v315, 1
    %v317 = vadd.f32 %v315, %v316
    %s318 = scalar_lea.vmem [#allocation2], 152
    %v319 = vld [vmem:[%s318] sm:$0xff]
    %v320 = vmul.f32 %v317, %v319
    %321 = vrot.lane.b32.xlu0 %v320, 1
    %v322 = vpop.permute.xlu0 %321
    %v323 = vadd.f32 %v320, %v322
    %324 = vrot.lane.b32.xlu0 %v323, 2
    %v325 = vpop.permute.xlu0 %324
    %v326 = vadd.f32 %v323, %v325
    %327 = vrot.lane.b32.xlu0 %v326, 4
    %v328 = vpop.permute.xlu0 %327
    %v329 = vadd.f32 %v326, %v328
    %331 = vrot.lane.b32.xlu0 %v329, 9
    %v332 = vpop.permute.xlu0 %331
    %v334 = vadd.f32 %v329, %v332
    %s335 = scalar_lea.vmem [#allocation2], 160
    %v336 = vld [vmem:[%s335] sm:$0xff]
    %338 = vset.pattern.permute.xlu0 7
    %339 = vperm.xlu0 %338, %v334
    %v340 = vpop.permute.xlu0 %339
    %v342 = vmul.f32 %v340, %v336
    %v343 = vrot.slane %v342, 4
    %v344 = vadd.f32 %v342, %v343
    %v345 = vrot.slane %v344, 2
    %v346 = vadd.f32 %v344, %v345
    %v347 = vrot.slane %v346, 1
    %v348 = vadd.f32 %v346, %v347
    %s349 = scalar_lea.vmem [#allocation2], 168
    %v350 = vld [vmem:[%s349] sm:$0xff]
    %v351 = vmul.f32 %v348, %v350
    %352 = vrot.lane.b32.xlu0 %v351, 1
    %v353 = vpop.permute.xlu0 %352
    %v354 = vadd.f32 %v351, %v353
    %355 = vrot.lane.b32.xlu0 %v354, 2
    %v356 = vpop.permute.xlu0 %355
    %v357 = vadd.f32 %v354, %v356
    %358 = vrot.lane.b32.xlu0 %v357, 4
    %v359 = vpop.permute.xlu0 %358
    %v360 = vadd.f32 %v357, %v359
    %362 = vrot.lane.b32.xlu0 %v360, 9
    %v363 = vpop.permute.xlu0 %362
    %v365 = vadd.f32 %v360, %v363
    %s366 = scalar_lea.vmem [#allocation2], 176
    %v367 = vld [vmem:[%s366] sm:$0xff]
    %369 = vset.pattern.permute.xlu0 7
    %370 = vperm.xlu0 %369, %v365
    %v371 = vpop.permute.xlu0 %370
    %v373 = vmul.f32 %v371, %v367
    %v374 = vrot.slane %v373, 4
    %v375 = vadd.f32 %v373, %v374
    %v376 = vrot.slane %v375, 2
    %v377 = vadd.f32 %v375, %v376
    %v378 = vrot.slane %v377, 1
    %v379 = vadd.f32 %v377, %v378
    %s380 = scalar_lea.vmem [#allocation2], 184
    %v381 = vld [vmem:[%s380] sm:$0xff]
    %v382 = vmul.f32 %v379, %v381
    %383 = vrot.lane.b32.xlu0 %v382, 1
    %v384 = vpop.permute.xlu0 %383
    %v385 = vadd.f32 %v382, %v384
    %386 = vrot.lane.b32.xlu0 %v385, 2
    %v387 = vpop.permute.xlu0 %386
    %v388 = vadd.f32 %v385, %v387
    %389 = vrot.lane.b32.xlu0 %v388, 4
    %v390 = vpop.permute.xlu0 %389
    %v391 = vadd.f32 %v388, %v390
    %393 = vrot.lane.b32.xlu0 %v391, 9
    %v394 = vpop.permute.xlu0 %393
    %v396 = vadd.f32 %v391, %v394
    %s397 = scalar_lea.vmem [#allocation2], 192
    %v398 = vld [vmem:[%s397] sm:$0xff]
    %400 = vset.pattern.permute.xlu0 7
    %401 = vperm.xlu0 %400, %v396
    %v402 = vpop.permute.xlu0 %401
    %v404 = vmul.f32 %v402, %v398
    %v405 = vrot.slane %v404, 4
    %v406 = vadd.f32 %v404, %v405
    %v407 = vrot.slane %v406, 2
    %v408 = vadd.f32 %v406, %v407
    %v409 = vrot.slane %v408, 1
    %v410 = vadd.f32 %v408, %v409
    %411 = vst [vmem:[%s2] sm:$0xff] %v410
    // Predicated region
    $region14: #{mlp_stack.1} parent=1 // pred_check
      _
    $region15: #{mlp_stack.1} parent=1 // pred_check_branch
      %413 = sbr.rel (0) target = $region17
    $region16: #{mlp_stack.1} parent=1 // pred_region
      _
    $region17: #{mlp_stack.1} parent=1 // pred_fallthru
      _
    // Predicated region
    $region18: #{mlp_stack.1} parent=1 // pred_check
      _
    $region19: #{mlp_stack.1} parent=1 // pred_check_branch
      %415 = sbr.rel (0) target = $region21
    $region20: #{mlp_stack.1} parent=1 // pred_region
      _
    $region21: #{mlp_stack.1} parent=1 // pred_fallthru
      _
    %416 = vsyncpa [#allocation3], 1

</llo_original>
